<compile_context>
chip_gen: v7x
topology: tpu7x:2x2x1
jax: 0.10.0
libtpu: 0.0.40
codegen_flags: <defaults>
</compile_context>

<pallas_src>
import jax
import jax.numpy as jnp
from jax import lax
from jax.experimental import pallas as pl
from jax.experimental.pallas import tpu as pltpu

# Problem sizes (small, deterministic synthetic config implied by the module).
T = 8           # sequence length
D_IN = 32       # in_dim
HID = 32        # hidden_dim
D_OUT = 32      # out_dim
K = 4           # temporal conv kernel size
C_GATE = 8.0    # RG-LRU sharpness constant c

SEQ_BLOCK = 2            # sequences processed per grid step
ROWS = SEQ_BLOCK * T     # rows (sequence-major) per grid step

assert D_IN == HID == D_OUT, "packed slab layout assumes a single 32-lane width"

# Row offsets inside the packed parameter slab (lane width = 32).
R_W_RIGHT = 0                    # right_linear weight   (D_IN, HID)
R_W_LEFT = R_W_RIGHT + D_IN      # left_linear weight    (D_IN, HID)
R_W_REC = R_W_LEFT + D_IN        # recurrence_gate       (HID, HID)
R_W_INP = R_W_REC + HID          # input_gate            (HID, HID)
R_W_OUT = R_W_INP + HID          # out weight            (HID, D_OUT)
R_CONV_W = R_W_OUT + HID         # conv taps             (K, HID)
R_CONV_B = R_CONV_W + K          # conv bias             (1, HID)
R_NLA = R_CONV_B + 1             # log(sigmoid(Lambda))  (1, HID)
R_B_RIGHT = R_NLA + 1            # right_linear bias
R_B_LEFT = R_B_RIGHT + 1         # left_linear bias
R_B_OUT = R_B_LEFT + 1           # out bias
SLAB_ROWS = R_B_OUT + 1          # 169


def recurrent_block_kernel(x_ref, p_ref, o_ref):
    x = x_ref[...]                                            # (ROWS, D_IN)

    # Within-sequence time index (rows are sequence-major inside the block); drives the
    # causal masks for both the conv and the scan and blocks cross-sequence leakage.
    t_idx = lax.broadcasted_iota(jnp.int32, (ROWS, HID), 0) % T

    # ---- input projections: separate dots so no lane-offset-32 activation slices ----
    proj_x = jnp.dot(x, p_ref[R_W_RIGHT:R_W_RIGHT + D_IN, :],
                     preferred_element_type=jnp.float32)
    proj_x = proj_x + p_ref[R_B_RIGHT:R_B_RIGHT + 1, :]
    left = jnp.dot(x, p_ref[R_W_LEFT:R_W_LEFT + D_IN, :],
                   preferred_element_type=jnp.float32)
    left = left + p_ref[R_B_LEFT:R_B_LEFT + 1, :]

    # ---- causal depthwise temporal conv (K=4, zero left-pad) via sublane rolls ----
    y = p_ref[R_CONV_B:R_CONV_B + 1, :] + p_ref[R_CONV_W + K - 1:R_CONV_W + K, :] * proj_x
    for k in range(K - 1):
        shift = K - 1 - k                                     # delay of tap k
        tap = jnp.where(t_idx >= shift, pltpu.roll(proj_x, shift, axis=0), 0.0)
        y = y + p_ref[R_CONV_W + k:R_CONV_W + k + 1, :] * tap

    # ---- RG-LRU gates (bias-free linears) ----
    r = jax.nn.sigmoid(jnp.dot(y, p_ref[R_W_REC:R_W_REC + HID, :],
                               preferred_element_type=jnp.float32))
    i = jax.nn.sigmoid(jnp.dot(y, p_ref[R_W_INP:R_W_INP + HID, :],
                               preferred_element_type=jnp.float32))
    log_a = C_GATE * r * p_ref[R_NLA:R_NLA + 1, :]            # <= 0, stable
    a = jnp.exp(log_a)
    beta = jnp.sqrt(jnp.maximum(1.0 - a * a, 0.0)) * (i * y)

    # ---- segmented Hillis-Steele scan: h_t = a_t * h_{t-1} + beta_t,  h_{-1} = 0 ----
    # Each row carries an affine map h -> A*h + B; composing within the sequence for
    # log2(T) doubling steps leaves h_t in B.  Out-of-segment neighbours use identity.
    av, bv = a, beta
    d = 1
    while d < T:
        valid = t_idx >= d
        a_prev = jnp.where(valid, pltpu.roll(av, d, axis=0), 1.0)
        b_prev = jnp.where(valid, pltpu.roll(bv, d, axis=0), 0.0)
        bv = bv + av * b_prev                                 # compose (bv before av)
        av = av * a_prev
        d *= 2
    h = bv                                                    # (ROWS, HID)

    # ---- gated output projection ----
    gated = h * jax.nn.gelu(left, approximate=True)
    out = jnp.dot(gated, p_ref[R_W_OUT:R_W_OUT + HID, :],
                  preferred_element_type=jnp.float32)
    o_ref[...] = (out + p_ref[R_B_OUT:R_B_OUT + 1, :]).astype(o_ref.dtype)


@jax.jit
def recurrent_block_forward(x, slab):
    """x: (B, T, D_IN) -> (B, T, D_OUT). One pallas_call, grid over sequence blocks."""
    b = x.shape[0]
    pad = (-b) % SEQ_BLOCK
    if pad:
        x = jnp.concatenate([x, jnp.zeros((pad, T, D_IN), x.dtype)], axis=0)
    bp = b + pad
    n_blocks = bp // SEQ_BLOCK

    out_flat = pl.pallas_call(
        recurrent_block_kernel,
        out_shape=jax.ShapeDtypeStruct((bp * T, D_OUT), jnp.float32),
        grid=(n_blocks,),
        in_specs=[
            pl.BlockSpec((ROWS, D_IN), lambda i: (i, 0)),
            # Grid-invariant weight slab: staged into VMEM once, never re-DMA'd.
            pl.BlockSpec((SLAB_ROWS, HID), lambda i: (0, 0)),
        ],
        out_specs=pl.BlockSpec((ROWS, D_OUT), lambda i: (i, 0)),
        compiler_params=pltpu.CompilerParams(dimension_semantics=("parallel",)),
    )(x.reshape(bp * T, D_IN), slab)
    return out_flat.reshape(bp, T, D_OUT)[:b]


def init_params(key):
    ks = jax.random.split(key, 11)
    s = 0.1
    return dict(
        w_right=jax.random.normal(ks[0], (D_IN, HID), jnp.float32) * s,
        w_left=jax.random.normal(ks[1], (D_IN, HID), jnp.float32) * s,
        b_right=jax.random.normal(ks[2], (HID,), jnp.float32) * s,
        b_left=jax.random.normal(ks[3], (HID,), jnp.float32) * s,
        conv_w=jax.random.normal(ks[4], (K, HID), jnp.float32) * s,
        conv_b=jax.random.normal(ks[5], (HID,), jnp.float32) * s,
        w_rec=jax.random.normal(ks[6], (HID, HID), jnp.float32) * s,
        w_inp=jax.random.normal(ks[7], (HID, HID), jnp.float32) * s,
        lambd=jax.random.normal(ks[8], (HID,), jnp.float32) + 2.0,
        w_out=jax.random.normal(ks[9], (HID, D_OUT), jnp.float32) * s,
        b_out=jax.random.normal(ks[10], (D_OUT,), jnp.float32) * s,
    )


def pack_params(p):
    """Pack every parameter into one (SLAB_ROWS, 32) f32 slab (single DMA-staged operand)."""
    slab = jnp.zeros((SLAB_ROWS, HID), jnp.float32)
    slab = slab.at[R_W_RIGHT:R_W_RIGHT + D_IN, :].set(p["w_right"])
    slab = slab.at[R_W_LEFT:R_W_LEFT + D_IN, :].set(p["w_left"])
    slab = slab.at[R_W_REC:R_W_REC + HID, :].set(p["w_rec"])
    slab = slab.at[R_W_INP:R_W_INP + HID, :].set(p["w_inp"])
    slab = slab.at[R_W_OUT:R_W_OUT + HID, :].set(p["w_out"])
    slab = slab.at[R_CONV_W:R_CONV_W + K, :].set(p["conv_w"])
    slab = slab.at[R_CONV_B, :].set(p["conv_b"])
    slab = slab.at[R_NLA, :].set(jax.nn.log_sigmoid(p["lambd"]))
    slab = slab.at[R_B_RIGHT, :].set(p["b_right"])
    slab = slab.at[R_B_LEFT, :].set(p["b_left"])
    slab = slab.at[R_B_OUT, :].set(p["b_out"])
    return slab


def recurrent_block_reference(x, p):
    """Pure-JAX reference: explicit zero-pad causal conv + sequential scan."""
    left = jax.nn.gelu(jnp.einsum("btd,dh->bth", x, p["w_left"]) + p["b_left"],
                       approximate=True)
    px = jnp.einsum("btd,dh->bth", x, p["w_right"]) + p["b_right"]
    px_pad = jnp.pad(px, ((0, 0), (K - 1, 0), (0, 0)))
    y = p["conv_b"] + sum(p["conv_w"][k] * px_pad[:, k:k + T, :] for k in range(K))
    r = jax.nn.sigmoid(jnp.einsum("bth,hg->btg", y, p["w_rec"]))
    i = jax.nn.sigmoid(jnp.einsum("bth,hg->btg", y, p["w_inp"]))
    a = jnp.exp(C_GATE * r * jax.nn.log_sigmoid(p["lambd"]))
    beta = jnp.sqrt(jnp.maximum(1.0 - a * a, 0.0)) * (i * y)
    h = jnp.zeros((x.shape[0], HID), jnp.float32)
    hs = []
    for t in range(T):
        h = a[:, t, :] * h + beta[:, t, :]
        hs.append(h)
    h_all = jnp.stack(hs, axis=1)
    return jnp.einsum("bth,hd->btd", h_all * left, p["w_out"]) + p["b_out"]


if __name__ == "__main__":
    B = 4  # small batch; grid = (B // SEQ_BLOCK,) = (2,) exercises the pipelined grid path
    key = jax.random.PRNGKey(0)
    kx, kp = jax.random.split(key)
    x = jax.random.normal(kx, (B, T, D_IN), jnp.float32)
    params = init_params(kp)
    slab = pack_params(params)

    out = jax.block_until_ready(recurrent_block_forward(x, slab))
    ref = recurrent_block_reference(x, params)

    assert out.shape == (B, T, D_OUT)
    assert bool(jnp.all(jnp.isfinite(out))), "non-finite output"
    # Tolerance covers MXU-vs-XLA f32 matmul precision / accumulation-order differences;
    # structural errors (wrong conv shift, scan, cross-sequence leakage) are >=1e-1.
    max_err = float(jnp.max(jnp.abs(out - ref)))
    assert jnp.allclose(out, ref, rtol=2e-3, atol=2e-3), (
        f"mismatch vs JAX reference (max abs err {max_err:.3e})")
    print("KERNEL_OK")
</pallas_src>

<mosaic_0001>
module attributes {stable_mosaic.version = 11 : i64} {
  func.func @recurrent_block_kernel(%arg0: i32, %arg1: memref<16x32xf32, #tpu.memory_space<vmem>>, %arg2: memref<169x32xf32, #tpu.memory_space<vmem>>, %arg3: memref<16x32xf32, #tpu.memory_space<vmem>>) attributes {dimension_semantics = [#tpu.dimension_semantics<parallel>], iteration_bounds = array<i64: 2>, scalar_prefetch = 0 : i64, scratch_operands = 0 : i64, tpu.core_type = #tpu.core_type<tc>, window_params = [{transform_indices = @transform_0, window_bounds = array<i64: 16, 32>}, {pipeline_mode = #tpu.pipeline_mode<synchronous>, transform_indices = @transform_1, window_bounds = array<i64: 169, 32>}, {transform_indices = @transform_2, window_bounds = array<i64: 16, 32>}]} {
    %c0 = arith.constant 0 : index
    %c0_0 = arith.constant 0 : index
    %0 = vector.load %arg1[%c0, %c0_0] : memref<16x32xf32, #tpu.memory_space<vmem>>, vector<16x32xf32>
    %1 = tpu.iota {dimensions = array<i32: 0>} : vector<16x32xi32>
    %c8_i32 = arith.constant 8 : i32
    %c0_i32 = arith.constant 0 : i32
    %2 = arith.cmpi eq, %c8_i32, %c0_i32 : i32
    %c1_i32 = arith.constant 1 : i32
    %3 = arith.select %2, %c1_i32, %c8_i32 : i32
    %4 = vector.broadcast %3 : i32 to vector<16x32xi32>
    %5 = arith.remsi %1, %4 : vector<16x32xi32>
    %c0_i32_1 = arith.constant 0 : i32
    %6 = vector.broadcast %c0_i32_1 : i32 to vector<16x32xi32>
    %7 = arith.cmpi ne, %5, %6 : vector<16x32xi32>
    %c0_i32_2 = arith.constant 0 : i32
    %8 = vector.broadcast %c0_i32_2 : i32 to vector<16x32xi32>
    %9 = arith.cmpi slt, %5, %8 : vector<16x32xi32>
    %c0_i32_3 = arith.constant 0 : i32
    %10 = arith.cmpi slt, %3, %c0_i32_3 : i32
    %11 = vector.broadcast %10 : i1 to vector<16x32xi1>
    %12 = vector.broadcast %11 : vector<16x32xi1> to vector<16x32xi1>
    %13 = arith.xori %9, %12 : vector<16x32xi1>
    %14 = arith.andi %13, %7 : vector<16x32xi1>
    %15 = vector.broadcast %3 : i32 to vector<16x32xi32>
    %16 = arith.addi %5, %15 : vector<16x32xi32>
    %17 = arith.select %14, %16, %5 : vector<16x32xi1>, vector<16x32xi32>
    %c0_4 = arith.constant 0 : index
    %c0_5 = arith.constant 0 : index
    %18 = vector.load %arg2[%c0_4, %c0_5] : memref<169x32xf32, #tpu.memory_space<vmem>>, vector<32x32xf32>
    %cst = arith.constant dense<0.000000e+00> : vector<16x32xf32>
    %19 = tpu.matmul %0, %18, %cst {dimension_numbers = #tpu.dot_dimension_numbers<[1], [0], [0], [1], [0, 0, 1, 1], [], []>} : vector<16x32xf32>, vector<32x32xf32>, vector<16x32xf32> -> vector<16x32xf32>
    %c166 = arith.constant 166 : index
    %c0_6 = arith.constant 0 : index
    %20 = vector.load %arg2[%c166, %c0_6] : memref<169x32xf32, #tpu.memory_space<vmem>>, vector<1x32xf32>
    %21 = vector.broadcast %20 : vector<1x32xf32> to vector<16x32xf32>
    %22 = arith.addf %19, %21 : vector<16x32xf32>
    %c32 = arith.constant 32 : index
    %c0_7 = arith.constant 0 : index
    %23 = vector.load %arg2[%c32, %c0_7] : memref<169x32xf32, #tpu.memory_space<vmem>>, vector<32x32xf32>
    %cst_8 = arith.constant dense<0.000000e+00> : vector<16x32xf32>
    %24 = tpu.matmul %0, %23, %cst_8 {dimension_numbers = #tpu.dot_dimension_numbers<[1], [0], [0], [1], [0, 0, 1, 1], [], []>} : vector<16x32xf32>, vector<32x32xf32>, vector<16x32xf32> -> vector<16x32xf32>
    %c167 = arith.constant 167 : index
    %c0_9 = arith.constant 0 : index
    %25 = vector.load %arg2[%c167, %c0_9] : memref<169x32xf32, #tpu.memory_space<vmem>>, vector<1x32xf32>
    %26 = vector.broadcast %25 : vector<1x32xf32> to vector<16x32xf32>
    %27 = arith.addf %24, %26 : vector<16x32xf32>
    %c164 = arith.constant 164 : index
    %c0_10 = arith.constant 0 : index
    %28 = vector.load %arg2[%c164, %c0_10] : memref<169x32xf32, #tpu.memory_space<vmem>>, vector<1x32xf32>
    %c163 = arith.constant 163 : index
    %c0_11 = arith.constant 0 : index
    %29 = vector.load %arg2[%c163, %c0_11] : memref<169x32xf32, #tpu.memory_space<vmem>>, vector<1x32xf32>
    %30 = vector.broadcast %29 : vector<1x32xf32> to vector<16x32xf32>
    %31 = arith.mulf %30, %22 : vector<16x32xf32>
    %32 = vector.broadcast %28 : vector<1x32xf32> to vector<16x32xf32>
    %33 = arith.addf %32, %31 : vector<16x32xf32>
    %c3_i32 = arith.constant 3 : i32
    %34 = vector.broadcast %c3_i32 : i32 to vector<16x32xi32>
    %35 = arith.cmpi sge, %17, %34 : vector<16x32xi32>
    %c3_i32_12 = arith.constant 3 : i32
    %36 = tpu.dynamic_rotate %22 by %c3_i32_12 dim 0 : vector<16x32xf32>, i32 -> vector<16x32xf32>
    %cst_13 = arith.constant 0.000000e+00 : f32
    %37 = vector.broadcast %cst_13 : f32 to vector<16x32xf32>
    %38 = arith.select %35, %36, %37 : vector<16x32xi1>, vector<16x32xf32>
    %c160 = arith.constant 160 : index
    %c0_14 = arith.constant 0 : index
    %39 = vector.load %arg2[%c160, %c0_14] : memref<169x32xf32, #tpu.memory_space<vmem>>, vector<1x32xf32>
    %40 = vector.broadcast %39 : vector<1x32xf32> to vector<16x32xf32>
    %41 = arith.mulf %40, %38 : vector<16x32xf32>
    %42 = arith.addf %33, %41 : vector<16x32xf32>
    %c2_i32 = arith.constant 2 : i32
    %43 = vector.broadcast %c2_i32 : i32 to vector<16x32xi32>
    %44 = arith.cmpi sge, %17, %43 : vector<16x32xi32>
    %c2_i32_15 = arith.constant 2 : i32
    %45 = tpu.dynamic_rotate %22 by %c2_i32_15 dim 0 : vector<16x32xf32>, i32 -> vector<16x32xf32>
    %cst_16 = arith.constant 0.000000e+00 : f32
    %46 = vector.broadcast %cst_16 : f32 to vector<16x32xf32>
    %47 = arith.select %44, %45, %46 : vector<16x32xi1>, vector<16x32xf32>
    %c161 = arith.constant 161 : index
    %c0_17 = arith.constant 0 : index
    %48 = vector.load %arg2[%c161, %c0_17] : memref<169x32xf32, #tpu.memory_space<vmem>>, vector<1x32xf32>
    %49 = vector.broadcast %48 : vector<1x32xf32> to vector<16x32xf32>
    %50 = arith.mulf %49, %47 : vector<16x32xf32>
    %51 = arith.addf %42, %50 : vector<16x32xf32>
    %c1_i32_18 = arith.constant 1 : i32
    %52 = vector.broadcast %c1_i32_18 : i32 to vector<16x32xi32>
    %53 = arith.cmpi sge, %17, %52 : vector<16x32xi32>
    %c1_i32_19 = arith.constant 1 : i32
    %54 = tpu.dynamic_rotate %22 by %c1_i32_19 dim 0 : vector<16x32xf32>, i32 -> vector<16x32xf32>
    %cst_20 = arith.constant 0.000000e+00 : f32
    %55 = vector.broadcast %cst_20 : f32 to vector<16x32xf32>
    %56 = arith.select %53, %54, %55 : vector<16x32xi1>, vector<16x32xf32>
    %c162 = arith.constant 162 : index
    %c0_21 = arith.constant 0 : index
    %57 = vector.load %arg2[%c162, %c0_21] : memref<169x32xf32, #tpu.memory_space<vmem>>, vector<1x32xf32>
    %58 = vector.broadcast %57 : vector<1x32xf32> to vector<16x32xf32>
    %59 = arith.mulf %58, %56 : vector<16x32xf32>
    %60 = arith.addf %51, %59 : vector<16x32xf32>
    %c64 = arith.constant 64 : index
    %c0_22 = arith.constant 0 : index
    %61 = vector.load %arg2[%c64, %c0_22] : memref<169x32xf32, #tpu.memory_space<vmem>>, vector<32x32xf32>
    %cst_23 = arith.constant dense<0.000000e+00> : vector<16x32xf32>
    %62 = tpu.matmul %60, %61, %cst_23 {dimension_numbers = #tpu.dot_dimension_numbers<[1], [0], [0], [1], [0, 0, 1, 1], [], []>} : vector<16x32xf32>, vector<32x32xf32>, vector<16x32xf32> -> vector<16x32xf32>
    %63 = arith.negf %62 : vector<16x32xf32>
    %64 = math.exp %63 : vector<16x32xf32>
    %cst_24 = arith.constant 1.000000e+00 : f32
    %65 = vector.broadcast %cst_24 : f32 to vector<16x32xf32>
    %66 = arith.addf %65, %64 : vector<16x32xf32>
    %67 = arith.divf %65, %66 : vector<16x32xf32>
    %c96 = arith.constant 96 : index
    %c0_25 = arith.constant 0 : index
    %68 = vector.load %arg2[%c96, %c0_25] : memref<169x32xf32, #tpu.memory_space<vmem>>, vector<32x32xf32>
    %cst_26 = arith.constant dense<0.000000e+00> : vector<16x32xf32>
    %69 = tpu.matmul %60, %68, %cst_26 {dimension_numbers = #tpu.dot_dimension_numbers<[1], [0], [0], [1], [0, 0, 1, 1], [], []>} : vector<16x32xf32>, vector<32x32xf32>, vector<16x32xf32> -> vector<16x32xf32>
    %70 = arith.negf %69 : vector<16x32xf32>
    %71 = math.exp %70 : vector<16x32xf32>
    %cst_27 = arith.constant 1.000000e+00 : f32
    %72 = vector.broadcast %cst_27 : f32 to vector<16x32xf32>
    %73 = arith.addf %72, %71 : vector<16x32xf32>
    %74 = arith.divf %72, %73 : vector<16x32xf32>
    %cst_28 = arith.constant 8.000000e+00 : f32
    %75 = vector.broadcast %cst_28 : f32 to vector<16x32xf32>
    %76 = arith.mulf %75, %67 : vector<16x32xf32>
    %c165 = arith.constant 165 : index
    %c0_29 = arith.constant 0 : index
    %77 = vector.load %arg2[%c165, %c0_29] : memref<169x32xf32, #tpu.memory_space<vmem>>, vector<1x32xf32>
    %78 = vector.broadcast %77 : vector<1x32xf32> to vector<16x32xf32>
    %79 = arith.mulf %76, %78 : vector<16x32xf32>
    %80 = math.exp %79 : vector<16x32xf32>
    %81 = arith.mulf %80, %80 : vector<16x32xf32>
    %cst_30 = arith.constant 1.000000e+00 : f32
    %82 = vector.broadcast %cst_30 : f32 to vector<16x32xf32>
    %83 = arith.subf %82, %81 : vector<16x32xf32>
    %cst_31 = arith.constant 0.000000e+00 : f32
    %84 = vector.broadcast %cst_31 : f32 to vector<16x32xf32>
    %85 = arith.maximumf %83, %84 : vector<16x32xf32>
    %86 = math.sqrt %85 : vector<16x32xf32>
    %87 = arith.mulf %74, %60 : vector<16x32xf32>
    %88 = arith.mulf %86, %87 : vector<16x32xf32>
    %c1_i32_32 = arith.constant 1 : i32
    %89 = vector.broadcast %c1_i32_32 : i32 to vector<16x32xi32>
    %90 = arith.cmpi sge, %17, %89 : vector<16x32xi32>
    %c1_i32_33 = arith.constant 1 : i32
    %91 = tpu.dynamic_rotate %80 by %c1_i32_33 dim 0 : vector<16x32xf32>, i32 -> vector<16x32xf32>
    %cst_34 = arith.constant 1.000000e+00 : f32
    %92 = vector.broadcast %cst_34 : f32 to vector<16x32xf32>
    %93 = arith.select %90, %91, %92 : vector<16x32xi1>, vector<16x32xf32>
    %c1_i32_35 = arith.constant 1 : i32
    %94 = tpu.dynamic_rotate %88 by %c1_i32_35 dim 0 : vector<16x32xf32>, i32 -> vector<16x32xf32>
    %cst_36 = arith.constant 0.000000e+00 : f32
    %95 = vector.broadcast %cst_36 : f32 to vector<16x32xf32>
    %96 = arith.select %90, %94, %95 : vector<16x32xi1>, vector<16x32xf32>
    %97 = arith.mulf %80, %96 : vector<16x32xf32>
    %98 = arith.addf %88, %97 : vector<16x32xf32>
    %99 = arith.mulf %80, %93 : vector<16x32xf32>
    %c2_i32_37 = arith.constant 2 : i32
    %100 = vector.broadcast %c2_i32_37 : i32 to vector<16x32xi32>
    %101 = arith.cmpi sge, %17, %100 : vector<16x32xi32>
    %c2_i32_38 = arith.constant 2 : i32
    %102 = tpu.dynamic_rotate %99 by %c2_i32_38 dim 0 : vector<16x32xf32>, i32 -> vector<16x32xf32>
    %cst_39 = arith.constant 1.000000e+00 : f32
    %103 = vector.broadcast %cst_39 : f32 to vector<16x32xf32>
    %104 = arith.select %101, %102, %103 : vector<16x32xi1>, vector<16x32xf32>
    %c2_i32_40 = arith.constant 2 : i32
    %105 = tpu.dynamic_rotate %98 by %c2_i32_40 dim 0 : vector<16x32xf32>, i32 -> vector<16x32xf32>
    %cst_41 = arith.constant 0.000000e+00 : f32
    %106 = vector.broadcast %cst_41 : f32 to vector<16x32xf32>
    %107 = arith.select %101, %105, %106 : vector<16x32xi1>, vector<16x32xf32>
    %108 = arith.mulf %99, %107 : vector<16x32xf32>
    %109 = arith.addf %98, %108 : vector<16x32xf32>
    %110 = arith.mulf %99, %104 : vector<16x32xf32>
    %c4_i32 = arith.constant 4 : i32
    %111 = vector.broadcast %c4_i32 : i32 to vector<16x32xi32>
    %112 = arith.cmpi sge, %17, %111 : vector<16x32xi32>
    %c4_i32_42 = arith.constant 4 : i32
    %113 = tpu.dynamic_rotate %109 by %c4_i32_42 dim 0 : vector<16x32xf32>, i32 -> vector<16x32xf32>
    %cst_43 = arith.constant 0.000000e+00 : f32
    %114 = vector.broadcast %cst_43 : f32 to vector<16x32xf32>
    %115 = arith.select %112, %113, %114 : vector<16x32xi1>, vector<16x32xf32>
    %116 = arith.mulf %110, %115 : vector<16x32xf32>
    %117 = arith.addf %109, %116 : vector<16x32xf32>
    %118 = arith.mulf %27, %27 : vector<16x32xf32>
    %119 = arith.mulf %27, %118 : vector<16x32xf32>
    %cst_44 = arith.constant 4.471500e-02 : f32
    %120 = vector.broadcast %cst_44 : f32 to vector<16x32xf32>
    %121 = arith.mulf %120, %119 : vector<16x32xf32>
    %122 = arith.addf %27, %121 : vector<16x32xf32>
    %cst_45 = arith.constant 0.797884583 : f32
    %123 = vector.broadcast %cst_45 : f32 to vector<16x32xf32>
    %124 = arith.mulf %123, %122 : vector<16x32xf32>
    %125 = math.tanh %124 : vector<16x32xf32>
    %cst_46 = arith.constant 1.000000e+00 : f32
    %126 = vector.broadcast %cst_46 : f32 to vector<16x32xf32>
    %127 = arith.addf %126, %125 : vector<16x32xf32>
    %cst_47 = arith.constant 5.000000e-01 : f32
    %128 = vector.broadcast %cst_47 : f32 to vector<16x32xf32>
    %129 = arith.mulf %128, %127 : vector<16x32xf32>
    %130 = arith.mulf %27, %129 : vector<16x32xf32>
    %131 = arith.mulf %117, %130 : vector<16x32xf32>
    %c128 = arith.constant 128 : index
    %c0_48 = arith.constant 0 : index
    %132 = vector.load %arg2[%c128, %c0_48] : memref<169x32xf32, #tpu.memory_space<vmem>>, vector<32x32xf32>
    %cst_49 = arith.constant dense<0.000000e+00> : vector<16x32xf32>
    %133 = tpu.matmul %131, %132, %cst_49 {dimension_numbers = #tpu.dot_dimension_numbers<[1], [0], [0], [1], [0, 0, 1, 1], [], []>} : vector<16x32xf32>, vector<32x32xf32>, vector<16x32xf32> -> vector<16x32xf32>
    %c168 = arith.constant 168 : index
    %c0_50 = arith.constant 0 : index
    %134 = vector.load %arg2[%c168, %c0_50] : memref<169x32xf32, #tpu.memory_space<vmem>>, vector<1x32xf32>
    %135 = vector.broadcast %134 : vector<1x32xf32> to vector<16x32xf32>
    %136 = arith.addf %133, %135 : vector<16x32xf32>
    %c0_51 = arith.constant 0 : index
    %c0_52 = arith.constant 0 : index
    %137 = vector.load %arg3[%c0_51, %c0_52] : memref<16x32xf32, #tpu.memory_space<vmem>>, vector<16x32xf32>
    tpu.vector_store %arg3[%c0_51, %c0_52], %136 {strides = array<i32>} : memref<16x32xf32, #tpu.memory_space<vmem>>, vector<16x32xf32>,
    return
  }
  func.func @transform_0(%arg0: i32) -> (i32, i32) {
    %c0_i32 = arith.constant 0 : i32
    %c0_i32_0 = arith.constant 0 : i32
    return %arg0, %c0_i32 : i32, i32
  }
  func.func @transform_1(%arg0: i32) -> (i32, i32) {
    %c0_i32 = arith.constant 0 : i32
    %c0_i32_0 = arith.constant 0 : i32
    %c0_i32_1 = arith.constant 0 : i32
    return %c0_i32, %c0_i32_0 : i32, i32
  }
  func.func @transform_2(%arg0: i32) -> (i32, i32) {
    %c0_i32 = arith.constant 0 : i32
    %c0_i32_0 = arith.constant 0 : i32
    return %arg0, %c0_i32 : i32, i32
  }
}

</mosaic_0001>

<llo_original>
// kernel: recurrent_block_forward.1
$region0: #{recurrent_block_forward.1}
  #allocation0 [shape = 'u32[]', space=smem, size = 0x4, offset = 0x4, fixed_abs, tag = 'smem constant byte address 0x4 - core index']
  #allocation1 [shape = 'u32[144,128]{1,0:T(1,128)}', space=vmem, size = 0x12000, scoped, tag = 'internal scratch']
  %s0 = inlined_call_operand.vmem [shape: f32[32,32], index: 0, kind: input, shape index: {}]
  %s1 = inlined_call_operand.vmem [shape: f32[169,32], index: 1, kind: input, shape index: {}]
  %s2 = inlined_call_operand.hbm [shape: f32[32,32], index: 2, kind: output, shape index: {}]
  %s3 = sld [smem:[#allocation0]]
  $region41: #{recurrent_block_forward.1} parent=0
    _
  %s5 = ssub.s32 1, %s3
  %s6 = scalar_select 0, %s5, %s3
  $region1: #{recurrent_block_forward.1} parent=0
    #allocation2 [shape = 'u8[16384]{0}', space=vmem, size = 0x4000, scoped, tag = 'output window, operand 0']
    #allocation3 [shape = 's32[2]{0}', space=sflag, size = 0x8, scoped, tag = 'scoped memory for recurrent_block_forward.1']
    %7 = vsyncpa [#allocation3], 0
    %s8 = scalar_lea.sflag [#allocation3], 1
    %9 = vsyncpa %s8, 0
    loop: start=0, step=1, limit=4
    $region2: #{recurrent_block_forward.1} parent=1 // loop_pre_header
      _
    $region3: #{recurrent_block_forward.1} parent=1 // loop_header
      %s11 = sphi 0, %s15
      %p12 = scmp.ge.s32.totalorder %s11, 4
      %s21 = sphi 0, %s23
      %s24 = sphi 0, %s21
      %s25 = sphi 0, %s24
      %s41 = sphi 0, %s25
      %s45 = sphi 0, %s45
      %s47 = sphi 0, %s45
      %s48 = sphi 0, %s47
      %s62 = sphi 0, %s48
      %s68 = sphi 0, %s70
      %s71 = sphi 0, %s68
      %s72 = sphi 0, %s71
      %s88 = sphi 0, %s72
    $region4: #{recurrent_block_forward.1} parent=1 // loop_header_branch
      %14 = sbr.rel (%p12) target = $region8
    $region5: #{recurrent_block_forward.1} parent=1 // loop_body
      %s16 = ssub.s32 %s11, 1
      %s17 = ssub.s32 %s11, 2
      %s18 = sadd.s32 %s11, 1
      %s19 = ssub.s32 %s11, %s18
      %p20 = scmp.eq.s32.totalorder %s19, 0
      %s22 = sadd.s32 %s21, 1
      %s23 = scalar_select %p20, %s21, %s22
      %p26 = pneg %p20
      %p27 = scmp.eq.s32.totalorder %s11, 1
      %p28 = por %p26, %p27
      %p29 = scmp.ne.s32.totalorder %s21, %s24
      %p30 = scmp.eq.s32.totalorder %s11, 0
      %p31 = por %p29, %p30
      %p32 = scmp.ne.s32.totalorder %s21, %s24
      %p33 = scmp.eq.s32.totalorder %s16, 1
      %p34 = por %p32, %p33
      %p35 = scmp.ne.s32.totalorder %s24, %s25
      %p36 = scmp.eq.s32.totalorder %s16, 0
      %p37 = por %p35, %p36
      %p38 = scmp.ne.s32.totalorder %s24, %s25
      %p39 = scmp.eq.s32.totalorder %s17, 1
      %p40 = por %p38, %p39
      %p42 = scmp.ne.s32.totalorder %s25, %s41
      %p43 = scmp.eq.s32.totalorder %s17, 0
      %p44 = por %p42, %p43
      %s46 = sadd.s32 %s45, 1
      %p49 = scmp.eq.s32.totalorder %s11, 1
      %p50 = scmp.ne.s32.totalorder %s45, %s47
      %p51 = scmp.eq.s32.totalorder %s11, 0
      %p52 = por %p50, %p51
      %p53 = scmp.ne.s32.totalorder %s45, %s47
      %p54 = scmp.eq.s32.totalorder %s16, 1
      %p55 = por %p53, %p54
      %p56 = scmp.ne.s32.totalorder %s47, %s48
      %p57 = scmp.eq.s32.totalorder %s16, 0
      %p58 = por %p56, %p57
      %p59 = scmp.ne.s32.totalorder %s47, %s48
      %p60 = scmp.eq.s32.totalorder %s17, 1
      %p61 = por %p59, %p60
      %p63 = scmp.ne.s32.totalorder %s48, %s62
      %p64 = scmp.eq.s32.totalorder %s17, 0
      %p65 = por %p63, %p64
      %s66 = ssub.s32 %s11, %s18
      %p67 = scmp.eq.s32.totalorder %s66, 0
      %s69 = sadd.s32 %s68, 1
      %s70 = scalar_select %p67, %s68, %s69
      %p73 = pneg %p67
      %p74 = scmp.eq.s32.totalorder %s11, 1
      %p75 = por %p73, %p74
      %p76 = scmp.ne.s32.totalorder %s68, %s71
      %p77 = scmp.eq.s32.totalorder %s11, 0
      %p78 = por %p76, %p77
      %p79 = scmp.ne.s32.totalorder %s68, %s71
      %p80 = scmp.eq.s32.totalorder %s16, 1
      %p81 = por %p79, %p80
      %p82 = scmp.ne.s32.totalorder %s71, %s72
      %p83 = scmp.eq.s32.totalorder %s16, 0
      %p84 = por %p82, %p83
      %p85 = scmp.ne.s32.totalorder %s71, %s72
      %p86 = scmp.eq.s32.totalorder %s17, 1
      %p87 = por %p85, %p86
      %p89 = scmp.ne.s32.totalorder %s72, %s88
      %p90 = scmp.eq.s32.totalorder %s17, 0
      %p91 = por %p89, %p90
      %p92 = scmp.le.s32.totalorder 1, %s11
      %p93 = scmp.lt.s32.totalorder %s11, 3
      %p94 = pnand %p92, %p93
      %p95 = pneg %p94
      // Predicated region
      $region9: #{recurrent_block_forward.1} parent=5 // pred_check
        _
      $region10: #{recurrent_block_forward.1} parent=5 // pred_check_branch
        %97 = sbr.rel (%p94) target = $region12
      $region11: #{recurrent_block_forward.1} parent=5 // pred_region
        %s98 = ssub.s32 %s11, 1
        // Predicated region
        $region13: #{recurrent_block_forward.1} parent=11 // pred_check
          %p99 = pneg %p58
        $region14: #{recurrent_block_forward.1} parent=11 // pred_check_branch
          %101 = sbr.rel (%p99) target = $region16
        $region15: #{recurrent_block_forward.1} parent=11 // pred_region
          _
        $region16: #{recurrent_block_forward.1} parent=11 // pred_fallthru
          _
      $region12: #{recurrent_block_forward.1} parent=5 // pred_fallthru
        _
      %p102 = scmp.lt.s32.totalorder %s11, 2
      // Predicated region
      $region17: #{recurrent_block_forward.1} parent=5 // pred_check
        %p103 = pneg %p102
      $region18: #{recurrent_block_forward.1} parent=5 // pred_check_branch
        %105 = sbr.rel (%p103) target = $region20
      $region19: #{recurrent_block_forward.1} parent=5 // pred_region
        // Predicated region
        $region21: #{recurrent_block_forward.1} parent=19 // pred_check
          %p106 = pneg %p31
        $region22: #{recurrent_block_forward.1} parent=19 // pred_check_branch
          %108 = sbr.rel (%p106) target = $region24
        $region23: #{recurrent_block_forward.1} parent=19 // pred_region
          %s109 = smul.u32 2, %s11
          %p110 = scmp.lt.s32.totalorder %s109, 3
          %s111 = scalar_select %p110, %s109, 3
          %s112 = smul.addr %s111, 8
          %s113 = scalar_lea.vmem %s0, %s112
          %s114 = smul.u32 2, %s11
        $region24: #{recurrent_block_forward.1} parent=19 // pred_fallthru
          _
      $region20: #{recurrent_block_forward.1} parent=5 // pred_fallthru
        _
      %p115 = scmp.le.s32.totalorder 1, %s11
      %p116 = scmp.lt.s32.totalorder %s11, 3
      %p117 = pnand %p115, %p116
      %p118 = pneg %p117
      // Predicated region
      $region25: #{recurrent_block_forward.1} parent=5 // pred_check
        _
      $region26: #{recurrent_block_forward.1} parent=5 // pred_check_branch
        %120 = sbr.rel (%p117) target = $region28
      $region27: #{recurrent_block_forward.1} parent=5 // pred_region
        %s121 = ssub.s32 %s11, 1
        %s122 = smul.u32 2, %s16
        %p123 = scmp.lt.s32.totalorder %s122, 3
        %s124 = scalar_select %p123, %s122, 3
        %s125 = smul.addr %s124, 8
        %s126 = scalar_lea.vmem %s0, %s125
        %p127 = pneg %p37
        %p128 = pneg %p34
        %p129 = pneg %p58
        %p130 = pneg %p55
        %p131 = pneg %p84
        %p132 = pneg %p81
        %s133 = sand.u32 %s71, 1
        %s134 = scalar_lea.sflag [#allocation3], %s133
        %s135 = sand.u32 %s71, 1
        %s136 = smul.addr %s135, 16
        %s137 = scalar_lea.vmem [#allocation2], %s136
        %s138 = smul.u32 2, %s16
        %p139 = scmp.lt.s32.totalorder %s138, 3
        %s140 = scalar_select %p139, %s138, 3
        %s141 = smul.addr %s140, 8
        %s142 = scalar_lea.vmem %s0, %s141
        %s143 = smul.u32 2, %s16
        %s144 = smul.u32 2, %s16
        %v145 = vld [vmem:[%s142] sm:$0xff]
        %v146 = vld [vmem:[%s142 + $0x8] sm:$0xff]
        %v147 = vlaneseq
        %v148 = vshrl.u32 %v147, 7
        %v149 = vadd.s32 %v148, 8
        %vm150 = vcmp.lt.s32.totalorder %v148, 0
        %v151 = vsub.s32 0, %v148
        %v152 = vsel %vm150, %v151, %v148
        %v153 = vshrl.u32 %v152, 3
        %v154 = vand.u32 %v152, 7
        %v155 = vsub.s32 0, %v154
        %v156 = vsel %vm150, %v155, %v154
        %vm157 = vcmp.lt.s32.totalorder %v149, 0
        %v158 = vsub.s32 0, %v149
        %v159 = vsel %vm157, %v158, %v149
        %v160 = vshrl.u32 %v159, 3
        %v161 = vand.u32 %v159, 7
        %v162 = vsub.s32 0, %v161
        %v163 = vsel %vm157, %v162, %v161
        %vm164 = vcmp.ne.s32.totalorder %v156, 0
        %vm165 = vcmp.ne.s32.totalorder %v163, 0
        %vm166 = vcmp.lt.s32.totalorder %v156, 0
        %vm167 = vcmp.lt.s32.totalorder %v163, 0
        %vm168 = vmand %vm166, %vm164
        %vm169 = vmand %vm167, %vm165
        %v170 = vadd.s32 %v156, 8
        %v171 = vadd.s32 %v163, 8
        %v172 = vsel %vm168, %v170, %v156
        %v173 = vsel %vm169, %v171, %v163
        %v174 = vld [vmem:[%s1] sm:$0xff]
        %v175 = vld [vmem:[%s1 + $0x8] sm:$0xff]
        %v176 = vld [vmem:[%s1 + $0x10] sm:$0xff]
        %v177 = vld [vmem:[%s1 + $0x18] sm:$0xff]
        %v178 = vld [vmem:[%s1 + $0xa6] sm:$0x1]
        %v179 = vlaneseq
        %v180 = vshrl.u32 %v179, 7
        %v181 = vsub.s32 0, %v180
        %v182 = vrot.slane %v178, %v181
        %vm183 = vcmask 261120
        %v185 = vsel %vm183, %v145, 0
        %v188 = vsel %vm183, %v146, 0
        %190 = vmatprep.subr.mxu0 0.0
        %191 = vmatpush1.msra.mxu0 %v174
        %192 = vmatprep.subr.mxu0 0.0
        %193 = vmatpush1.msra.mxu0 %v175
        %194 = vmatprep.subr.mxu0 0.0
        %195 = vmatpush1.msra.mxu0 %v176
        %196 = vmatprep.subr.mxu0 0.0
        %197 = vmatpush1.msra.mxu0 %v177
        %198 = vmatprep.subr.mxu0 0.0
        %199 = vmatpush1.msra.mxu0 0.0
        %200 = vmatprep.subr.mxu0 0.0
        %201 = vmatpush1.msra.mxu0 0.0
        %202 = vmatprep.subr.mxu0 0.0
        %203 = vmatpush1.msra.mxu0 0.0
        %204 = vmatprep.subr.mxu0 0.0
        %205 = vmatpush1.msra.mxu0 0.0
        %206 = vmatprep.subr.mxu0 0.0
        %207 = vmatpush1.msra.mxu0 0.0
        %208 = vmatprep.subr.mxu0 0.0
        %209 = vmatpush1.msra.mxu0 0.0
        %210 = vmatprep.subr.mxu0 0.0
        %211 = vmatpush1.msra.mxu0 0.0
        %212 = vmatprep.subr.mxu0 0.0
        %213 = vmatpush1.msra.mxu0 0.0
        %214 = vmatprep.subr.mxu0 0.0
        %215 = vmatpush1.msra.mxu0 0.0
        %216 = vmatprep.subr.mxu0 0.0
        %217 = vmatpush1.msra.mxu0 0.0
        %218 = vmatprep.subr.mxu0 0.0
        %219 = vmatpush1.msra.mxu0 0.0
        %220 = vmatprep.subr.mxu0 0.0
        %221 = vmatpush1.msra.mxu0 0.0
        %222 = vmatprep.subr.mxu0 0.0
        %223 = vmatpush1.msra.mxu0 0.0
        %224 = vmatprep.subr.mxu0 0.0
        %225 = vmatpush1.msra.mxu0 0.0
        %226 = vmatprep.subr.mxu0 0.0
        %227 = vmatpush1.msra.mxu0 0.0
        %228 = vmatprep.subr.mxu0 0.0
        %229 = vmatpush1.msra.mxu0 0.0
        %230 = vmatprep.subr.mxu0 0.0
        %231 = vmatpush1.msra.mxu0 0.0
        %232 = vmatprep.subr.mxu0 0.0
        %233 = vmatpush1.msra.mxu0 0.0
        %234 = vmatprep.subr.mxu0 0.0
        %235 = vmatpush1.msra.mxu0 0.0
        %236 = vmatprep.subr.mxu0 0.0
        %237 = vmatpush1.msra.mxu0 0.0
        %238 = vmatprep.subr.mxu0 0.0
        %239 = vmatpush1.msra.mxu0 0.0
        %240 = vmatprep.subr.mxu0 0.0
        %241 = vmatpush1.msra.mxu0 0.0
        %242 = vmatprep.subr.mxu0 0.0
        %243 = vmatpush1.msra.mxu0 0.0
        %244 = vmatprep.subr.mxu0 0.0
        %245 = vmatpush1.msra.mxu0 0.0
        %246 = vmatprep.subr.mxu0 0.0
        %247 = vmatpush1.msra.mxu0 0.0
        %248 = vmatprep.subr.mxu0 0.0
        %249 = vmatpush1.msra.mxu0 0.0
        %250 = vmatprep.subr.mxu0 0.0
        %251 = vmatpush1.msra.mxu0 0.0
        %252 = vmatprep.subr.mxu0 0.0
        %253 = vmatpush1.msra.mxu0 0.0
        %254 = vmatprep.mubr.f32.mxu0 0.0
        %255 = vmatmul.mubr.f32.gmra.mrb[0].mxu0 %v185
        %v256 = vpop.f32.mrb[0].mxu0
        %v257 = vadd.f32 %v182, %v256
        %v258 = vpop.f32.mrb[0].mxu0
        %259 = vmatprep.mubr.f32.mxu0 0.0
        %260 = vmatmul.mubr.f32.gmra.mrb[0].mxu0 %v188
        %v261 = vpop.f32.mrb[0].mxu0
        %v262 = vadd.f32 %v182, %v261
        %v263 = vpop.f32.mrb[0].mxu0
        %264 = vdwg.mxu0
        %v265 = vld [vmem:[%s1 + $0x20] sm:$0xff]
        %v266 = vld [vmem:[%s1 + $0x28] sm:$0xff]
        %v267 = vld [vmem:[%s1 + $0x30] sm:$0xff]
        %v268 = vld [vmem:[%s1 + $0x38] sm:$0xff]
        %v269 = vld [vmem:[%s1 + $0xa7] sm:$0x1]
        %v270 = vlaneseq
        %v271 = vshrl.u32 %v270, 7
        %v272 = vsub.s32 0, %v271
        %v273 = vrot.slane %v269, %v272
        %274 = vmatprep.subr.mxu0 0.0
        %275 = vmatpush1.msra.mxu0 %v265
        %276 = vmatprep.subr.mxu0 0.0
        %277 = vmatpush1.msra.mxu0 %v266
        %278 = vmatprep.subr.mxu0 0.0
        %279 = vmatpush1.msra.mxu0 %v267
        %280 = vmatprep.subr.mxu0 0.0
        %281 = vmatpush1.msra.mxu0 %v268
        %282 = vmatprep.subr.mxu0 0.0
        %283 = vmatpush1.msra.mxu0 0.0
        %284 = vmatprep.subr.mxu0 0.0
        %285 = vmatpush1.msra.mxu0 0.0
        %286 = vmatprep.subr.mxu0 0.0
        %287 = vmatpush1.msra.mxu0 0.0
        %288 = vmatprep.subr.mxu0 0.0
        %289 = vmatpush1.msra.mxu0 0.0
        %290 = vmatprep.subr.mxu0 0.0
        %291 = vmatpush1.msra.mxu0 0.0
        %292 = vmatprep.subr.mxu0 0.0
        %293 = vmatpush1.msra.mxu0 0.0
        %294 = vmatprep.subr.mxu0 0.0
        %295 = vmatpush1.msra.mxu0 0.0
        %296 = vmatprep.subr.mxu0 0.0
        %297 = vmatpush1.msra.mxu0 0.0
        %298 = vmatprep.subr.mxu0 0.0
        %299 = vmatpush1.msra.mxu0 0.0
        %300 = vmatprep.subr.mxu0 0.0
        %301 = vmatpush1.msra.mxu0 0.0
        %302 = vmatprep.subr.mxu0 0.0
        %303 = vmatpush1.msra.mxu0 0.0
        %304 = vmatprep.subr.mxu0 0.0
        %305 = vmatpush1.msra.mxu0 0.0
        %306 = vmatprep.subr.mxu0 0.0
        %307 = vmatpush1.msra.mxu0 0.0
        %308 = vmatprep.subr.mxu0 0.0
        %309 = vmatpush1.msra.mxu0 0.0
        %310 = vmatprep.subr.mxu0 0.0
        %311 = vmatpush1.msra.mxu0 0.0
        %312 = vmatprep.subr.mxu0 0.0
        %313 = vmatpush1.msra.mxu0 0.0
        %314 = vmatprep.subr.mxu0 0.0
        %315 = vmatpush1.msra.mxu0 0.0
        %316 = vmatprep.subr.mxu0 0.0
        %317 = vmatpush1.msra.mxu0 0.0
        %318 = vmatprep.subr.mxu0 0.0
        %319 = vmatpush1.msra.mxu0 0.0
        %320 = vmatprep.subr.mxu0 0.0
        %321 = vmatpush1.msra.mxu0 0.0
        %322 = vmatprep.subr.mxu0 0.0
        %323 = vmatpush1.msra.mxu0 0.0
        %324 = vmatprep.subr.mxu0 0.0
        %325 = vmatpush1.msra.mxu0 0.0
        %326 = vmatprep.subr.mxu0 0.0
        %327 = vmatpush1.msra.mxu0 0.0
        %328 = vmatprep.subr.mxu0 0.0
        %329 = vmatpush1.msra.mxu0 0.0
        %330 = vmatprep.subr.mxu0 0.0
        %331 = vmatpush1.msra.mxu0 0.0
        %332 = vmatprep.subr.mxu0 0.0
        %333 = vmatpush1.msra.mxu0 0.0
        %334 = vmatprep.subr.mxu0 0.0
        %335 = vmatpush1.msra.mxu0 0.0
        %336 = vmatprep.subr.mxu0 0.0
        %337 = vmatpush1.msra.mxu0 0.0
        %338 = vmatprep.mubr.f32.mxu0 0.0
        %339 = vmatmul.mubr.f32.gmra.mrb[0].mxu0 %v185
        %v340 = vpop.f32.mrb[0].mxu0
        %v341 = vadd.f32 %v273, %v340
        %v342 = vpop.f32.mrb[0].mxu0
        %343 = vmatprep.mubr.f32.mxu0 0.0
        %344 = vmatmul.mubr.f32.gmra.mrb[0].mxu0 %v188
        %v345 = vpop.f32.mrb[0].mxu0
        %v346 = vadd.f32 %v273, %v345
        %v347 = vpop.f32.mrb[0].mxu0
        %348 = vdwg.mxu0
        %v349 = vld [vmem:[%s1 + $0xa4] sm:$0x1]
        %v350 = vld [vmem:[%s1 + $0xa3] sm:$0x1]
        %v351 = vlaneseq
        %v352 = vshrl.u32 %v351, 7
        %v353 = vsub.s32 0, %v352
        %v354 = vrot.slane %v350, %v353
        %v355 = vmul.f32 %v354, %v257
        %v356 = vmul.f32 %v354, %v262
        %v357 = vlaneseq
        %v358 = vshrl.u32 %v357, 7
        %v359 = vsub.s32 0, %v358
        %v360 = vrot.slane %v349, %v359
        %v361 = vadd.f32 %v360, %v355
        %v362 = vadd.f32 %v360, %v356
        %vm363 = vcmp.ge.s32.totalorder %v172, 3
        %vm364 = vcmp.ge.s32.totalorder %v173, 3
        %v365 = vrot.slane %v257, 5
        %v366 = vrot.slane %v262, 5
        %vm367 = vcmp.lt.s32.totalorder %v148, 3
        %v368 = vsel %vm367, %v365, %v366
        %v369 = vsel %vm367, %v366, %v365
        %v370 = vsel %vm363, %v369, 0.0
        %v371 = vsel %vm364, %v368, 0.0
        %v372 = vld [vmem:[%s1 + $0xa0] sm:$0x1]
        %v373 = vlaneseq
        %v374 = vshrl.u32 %v373, 7
        %v375 = vsub.s32 0, %v374
        %v376 = vrot.slane %v372, %v375
        %v377 = vmul.f32 %v376, %v370
        %v378 = vmul.f32 %v376, %v371
        %v379 = vadd.f32 %v361, %v377
        %v380 = vadd.f32 %v362, %v378
        %vm381 = vcmp.ge.s32.totalorder %v172, 2
        %vm382 = vcmp.ge.s32.totalorder %v173, 2
        %v383 = vrot.slane %v257, 6
        %v384 = vrot.slane %v262, 6
        %vm385 = vcmp.lt.s32.totalorder %v148, 2
        %v386 = vsel %vm385, %v383, %v384
        %v387 = vsel %vm385, %v384, %v383
        %v388 = vsel %vm381, %v387, 0.0
        %v389 = vsel %vm382, %v386, 0.0
        %v390 = vld [vmem:[%s1 + $0xa1] sm:$0x1]
        %v391 = vlaneseq
        %v392 = vshrl.u32 %v391, 7
        %v393 = vsub.s32 0, %v392
        %v394 = vrot.slane %v390, %v393
        %v395 = vmul.f32 %v394, %v388
        %v396 = vmul.f32 %v394, %v389
        %v397 = vadd.f32 %v379, %v395
        %v398 = vadd.f32 %v380, %v396
        %vm399 = vcmp.ge.s32.totalorder %v172, 1
        %vm400 = vcmp.ge.s32.totalorder %v173, 1
        %v401 = vrot.slane %v257, 7
        %v402 = vrot.slane %v262, 7
        %vm403 = vcmp.lt.s32.totalorder %v148, 1
        %v404 = vsel %vm403, %v401, %v402
        %v405 = vsel %vm403, %v402, %v401
        %v406 = vsel %vm399, %v405, 0.0
        %v407 = vsel %vm400, %v404, 0.0
        %v408 = vld [vmem:[%s1 + $0xa2] sm:$0x1]
        %v409 = vlaneseq
        %v410 = vshrl.u32 %v409, 7
        %v411 = vsub.s32 0, %v410
        %v412 = vrot.slane %v408, %v411
        %v413 = vmul.f32 %v412, %v406
        %v414 = vmul.f32 %v412, %v407
        %v415 = vadd.f32 %v397, %v413
        %v416 = vadd.f32 %v398, %v414
        %v417 = vld [vmem:[%s1 + $0x40] sm:$0xff]
        %v418 = vld [vmem:[%s1 + $0x48] sm:$0xff]
        %v419 = vld [vmem:[%s1 + $0x50] sm:$0xff]
        %v420 = vld [vmem:[%s1 + $0x58] sm:$0xff]
        %v422 = vsel %vm183, %v415, 0
        %v425 = vsel %vm183, %v416, 0
        %427 = vmatprep.subr.mxu0 0.0
        %428 = vmatpush1.msra.mxu0 %v417
        %429 = vmatprep.subr.mxu0 0.0
        %430 = vmatpush1.msra.mxu0 %v418
        %431 = vmatprep.subr.mxu0 0.0
        %432 = vmatpush1.msra.mxu0 %v419
        %433 = vmatprep.subr.mxu0 0.0
        %434 = vmatpush1.msra.mxu0 %v420
        %435 = vmatprep.subr.mxu0 0.0
        %436 = vmatpush1.msra.mxu0 0.0
        %437 = vmatprep.subr.mxu0 0.0
        %438 = vmatpush1.msra.mxu0 0.0
        %439 = vmatprep.subr.mxu0 0.0
        %440 = vmatpush1.msra.mxu0 0.0
        %441 = vmatprep.subr.mxu0 0.0
        %442 = vmatpush1.msra.mxu0 0.0
        %443 = vmatprep.subr.mxu0 0.0
        %444 = vmatpush1.msra.mxu0 0.0
        %445 = vmatprep.subr.mxu0 0.0
        %446 = vmatpush1.msra.mxu0 0.0
        %447 = vmatprep.subr.mxu0 0.0
        %448 = vmatpush1.msra.mxu0 0.0
        %449 = vmatprep.subr.mxu0 0.0
        %450 = vmatpush1.msra.mxu0 0.0
        %451 = vmatprep.subr.mxu0 0.0
        %452 = vmatpush1.msra.mxu0 0.0
        %453 = vmatprep.subr.mxu0 0.0
        %454 = vmatpush1.msra.mxu0 0.0
        %455 = vmatprep.subr.mxu0 0.0
        %456 = vmatpush1.msra.mxu0 0.0
        %457 = vmatprep.subr.mxu0 0.0
        %458 = vmatpush1.msra.mxu0 0.0
        %459 = vmatprep.subr.mxu0 0.0
        %460 = vmatpush1.msra.mxu0 0.0
        %461 = vmatprep.subr.mxu0 0.0
        %462 = vmatpush1.msra.mxu0 0.0
        %463 = vmatprep.subr.mxu0 0.0
        %464 = vmatpush1.msra.mxu0 0.0
        %465 = vmatprep.subr.mxu0 0.0
        %466 = vmatpush1.msra.mxu0 0.0
        %467 = vmatprep.subr.mxu0 0.0
        %468 = vmatpush1.msra.mxu0 0.0
        %469 = vmatprep.subr.mxu0 0.0
        %470 = vmatpush1.msra.mxu0 0.0
        %471 = vmatprep.subr.mxu0 0.0
        %472 = vmatpush1.msra.mxu0 0.0
        %473 = vmatprep.subr.mxu0 0.0
        %474 = vmatpush1.msra.mxu0 0.0
        %475 = vmatprep.subr.mxu0 0.0
        %476 = vmatpush1.msra.mxu0 0.0
        %477 = vmatprep.subr.mxu0 0.0
        %478 = vmatpush1.msra.mxu0 0.0
        %479 = vmatprep.subr.mxu0 0.0
        %480 = vmatpush1.msra.mxu0 0.0
        %481 = vmatprep.subr.mxu0 0.0
        %482 = vmatpush1.msra.mxu0 0.0
        %483 = vmatprep.subr.mxu0 0.0
        %484 = vmatpush1.msra.mxu0 0.0
        %485 = vmatprep.subr.mxu0 0.0
        %486 = vmatpush1.msra.mxu0 0.0
        %487 = vmatprep.subr.mxu0 0.0
        %488 = vmatpush1.msra.mxu0 0.0
        %489 = vmatprep.subr.mxu0 0.0
        %490 = vmatpush1.msra.mxu0 0.0
        %491 = vmatprep.mubr.f32.mxu0 0.0
        %492 = vmatmul.mubr.f32.gmra.mrb[0].mxu0 %v422
        %v493 = vpop.f32.mrb[0].mxu0
        %v494 = vadd.f32 0.0, %v493
        %v495 = vpop.f32.mrb[0].mxu0
        %496 = vmatprep.mubr.f32.mxu0 0.0
        %497 = vmatmul.mubr.f32.gmra.mrb[0].mxu0 %v425
        %v498 = vpop.f32.mrb[0].mxu0
        %v499 = vadd.f32 0.0, %v498
        %v500 = vpop.f32.mrb[0].mxu0
        %501 = vdwg.mxu0
        %v502 = vxor.u32 %v494, 2147483648
        %v503 = vxor.u32 %v499, 2147483648
        %v504 = vmul.f32 %v502, 1.442695
        %v505 = vpow.pop %v504
        %v506 = vmul.f32 %v503, 1.442695
        %v507 = vpow.pop %v506
        %v508 = vadd.f32 %v505, 1.0
        %v509 = vadd.f32 %v507, 1.0
        %v510 = vrcp.pop %v508
        %v511 = vmul.f32 1.0, %v510
        %v512 = vrcp.pop %v509
        %v513 = vmul.f32 1.0, %v512
        %v514 = vld [vmem:[%s1 + $0x60] sm:$0xff]
        %v515 = vld [vmem:[%s1 + $0x68] sm:$0xff]
        %v516 = vld [vmem:[%s1 + $0x70] sm:$0xff]
        %v517 = vld [vmem:[%s1 + $0x78] sm:$0xff]
        %518 = vmatprep.subr.mxu0 0.0
        %519 = vmatpush1.msra.mxu0 %v514
        %520 = vmatprep.subr.mxu0 0.0
        %521 = vmatpush1.msra.mxu0 %v515
        %522 = vmatprep.subr.mxu0 0.0
        %523 = vmatpush1.msra.mxu0 %v516
        %524 = vmatprep.subr.mxu0 0.0
        %525 = vmatpush1.msra.mxu0 %v517
        %526 = vmatprep.subr.mxu0 0.0
        %527 = vmatpush1.msra.mxu0 0.0
        %528 = vmatprep.subr.mxu0 0.0
        %529 = vmatpush1.msra.mxu0 0.0
        %530 = vmatprep.subr.mxu0 0.0
        %531 = vmatpush1.msra.mxu0 0.0
        %532 = vmatprep.subr.mxu0 0.0
        %533 = vmatpush1.msra.mxu0 0.0
        %534 = vmatprep.subr.mxu0 0.0
        %535 = vmatpush1.msra.mxu0 0.0
        %536 = vmatprep.subr.mxu0 0.0
        %537 = vmatpush1.msra.mxu0 0.0
        %538 = vmatprep.subr.mxu0 0.0
        %539 = vmatpush1.msra.mxu0 0.0
        %540 = vmatprep.subr.mxu0 0.0
        %541 = vmatpush1.msra.mxu0 0.0
        %542 = vmatprep.subr.mxu0 0.0
        %543 = vmatpush1.msra.mxu0 0.0
        %544 = vmatprep.subr.mxu0 0.0
        %545 = vmatpush1.msra.mxu0 0.0
        %546 = vmatprep.subr.mxu0 0.0
        %547 = vmatpush1.msra.mxu0 0.0
        %548 = vmatprep.subr.mxu0 0.0
        %549 = vmatpush1.msra.mxu0 0.0
        %550 = vmatprep.subr.mxu0 0.0
        %551 = vmatpush1.msra.mxu0 0.0
        %552 = vmatprep.subr.mxu0 0.0
        %553 = vmatpush1.msra.mxu0 0.0
        %554 = vmatprep.subr.mxu0 0.0
        %555 = vmatpush1.msra.mxu0 0.0
        %556 = vmatprep.subr.mxu0 0.0
        %557 = vmatpush1.msra.mxu0 0.0
        %558 = vmatprep.subr.mxu0 0.0
        %559 = vmatpush1.msra.mxu0 0.0
        %560 = vmatprep.subr.mxu0 0.0
        %561 = vmatpush1.msra.mxu0 0.0
        %562 = vmatprep.subr.mxu0 0.0
        %563 = vmatpush1.msra.mxu0 0.0
        %564 = vmatprep.subr.mxu0 0.0
        %565 = vmatpush1.msra.mxu0 0.0
        %566 = vmatprep.subr.mxu0 0.0
        %567 = vmatpush1.msra.mxu0 0.0
        %568 = vmatprep.subr.mxu0 0.0
        %569 = vmatpush1.msra.mxu0 0.0
        %570 = vmatprep.subr.mxu0 0.0
        %571 = vmatpush1.msra.mxu0 0.0
        %572 = vmatprep.subr.mxu0 0.0
        %573 = vmatpush1.msra.mxu0 0.0
        %574 = vmatprep.subr.mxu0 0.0
        %575 = vmatpush1.msra.mxu0 0.0
        %576 = vmatprep.subr.mxu0 0.0
        %577 = vmatpush1.msra.mxu0 0.0
        %578 = vmatprep.subr.mxu0 0.0
        %579 = vmatpush1.msra.mxu0 0.0
        %580 = vmatprep.subr.mxu0 0.0
        %581 = vmatpush1.msra.mxu0 0.0
        %582 = vmatprep.mubr.f32.mxu0 0.0
        %583 = vmatmul.mubr.f32.gmra.mrb[0].mxu0 %v422
        %v584 = vpop.f32.mrb[0].mxu0
        %v585 = vadd.f32 0.0, %v584
        %v586 = vpop.f32.mrb[0].mxu0
        %587 = vmatprep.mubr.f32.mxu0 0.0
        %588 = vmatmul.mubr.f32.gmra.mrb[0].mxu0 %v425
        %v589 = vpop.f32.mrb[0].mxu0
        %v590 = vadd.f32 0.0, %v589
        %v591 = vpop.f32.mrb[0].mxu0
        %592 = vdwg.mxu0
        %v593 = vxor.u32 %v585, 2147483648
        %v594 = vxor.u32 %v590, 2147483648
        %v595 = vmul.f32 %v593, 1.442695
        %v596 = vpow.pop %v595
        %v597 = vmul.f32 %v594, 1.442695
        %v598 = vpow.pop %v597
        %v599 = vadd.f32 %v596, 1.0
        %v600 = vadd.f32 %v598, 1.0
        %v601 = vrcp.pop %v599
        %v602 = vmul.f32 1.0, %v601
        %v603 = vrcp.pop %v600
        %v604 = vmul.f32 1.0, %v603
        %v605 = vmul.f32 %v511, 8.0
        %v606 = vmul.f32 %v513, 8.0
        %v607 = vld [vmem:[%s1 + $0xa5] sm:$0x1]
        %v608 = vlaneseq
        %v609 = vshrl.u32 %v608, 7
        %v610 = vsub.s32 0, %v609
        %v611 = vrot.slane %v607, %v610
        %v612 = vmul.f32 %v605, %v611
        %v613 = vmul.f32 %v606, %v611
        %v614 = vmul.f32 %v612, 1.442695
        %v615 = vpow.pop %v614
        %v616 = vmul.f32 %v613, 1.442695
        %v617 = vpow.pop %v616
        %v618 = vmul.f32 %v615, %v615
        %v619 = vmul.f32 %v617, %v617
        %v620 = vsub.f32 1.0, %v618
        %v621 = vsub.f32 1.0, %v619
        %v622 = vmax.f32 %v620, 0.0
        %v623 = vmax.f32 %v621, 0.0
        %v624 = vrsqrt.pop %v622
        %v625 = vmul.f32 %v622, %v624
        %vm626 = vcmp.eq.f32.partialorder %v622, inf
        %v627 = vsel %vm626, %v622, %v625
        %vm628 = vcmp.eq.f32.partialorder %v622, 0.0
        %v629 = vand.u32 %v622, 2147483648
        %v630 = vsel %vm628, %v629, %v627
        %v631 = vrsqrt.pop %v623
        %v632 = vmul.f32 %v623, %v631
        %vm633 = vcmp.eq.f32.partialorder %v623, inf
        %v634 = vsel %vm633, %v623, %v632
        %vm635 = vcmp.eq.f32.partialorder %v623, 0.0
        %v636 = vand.u32 %v623, 2147483648
        %v637 = vsel %vm635, %v636, %v634
        %v638 = vmul.f32 %v602, %v415
        %v639 = vmul.f32 %v604, %v416
        %v640 = vmul.f32 %v630, %v638
        %v641 = vmul.f32 %v637, %v639
        %v642 = vrot.slane %v615, 7
        %v643 = vrot.slane %v617, 7
        %v644 = vsel %vm403, %v642, %v643
        %v645 = vsel %vm403, %v643, %v642
        %v646 = vsel %vm399, %v645, 1.0
        %v647 = vsel %vm400, %v644, 1.0
        %v648 = vrot.slane %v640, 7
        %v649 = vrot.slane %v641, 7
        %v650 = vsel %vm403, %v648, %v649
        %v651 = vsel %vm403, %v649, %v648
        %v652 = vsel %vm399, %v651, 0.0
        %v653 = vsel %vm400, %v650, 0.0
        %v654 = vmul.f32 %v615, %v652
        %v655 = vmul.f32 %v617, %v653
        %v656 = vadd.f32 %v640, %v654
        %v657 = vadd.f32 %v641, %v655
        %v658 = vmul.f32 %v615, %v646
        %v659 = vmul.f32 %v617, %v647
        %v660 = vrot.slane %v658, 6
        %v661 = vrot.slane %v659, 6
        %v662 = vsel %vm385, %v660, %v661
        %v663 = vsel %vm385, %v661, %v660
        %v664 = vsel %vm381, %v663, 1.0
        %v665 = vsel %vm382, %v662, 1.0
        %v666 = vrot.slane %v656, 6
        %v667 = vrot.slane %v657, 6
        %v668 = vsel %vm385, %v666, %v667
        %v669 = vsel %vm385, %v667, %v666
        %v670 = vsel %vm381, %v669, 0.0
        %v671 = vsel %vm382, %v668, 0.0
        %v672 = vmul.f32 %v658, %v670
        %v673 = vmul.f32 %v659, %v671
        %v674 = vadd.f32 %v656, %v672
        %v675 = vadd.f32 %v657, %v673
        %v676 = vmul.f32 %v658, %v664
        %v677 = vmul.f32 %v659, %v665
        %vm678 = vcmp.ge.s32.totalorder %v172, 4
        %vm679 = vcmp.ge.s32.totalorder %v173, 4
        %v680 = vrot.slane %v674, 4
        %v681 = vrot.slane %v675, 4
        %vm682 = vcmp.lt.s32.totalorder %v148, 4
        %v683 = vsel %vm682, %v680, %v681
        %v684 = vsel %vm682, %v681, %v680
        %v685 = vsel %vm678, %v684, 0.0
        %v686 = vsel %vm679, %v683, 0.0
        %v687 = vmul.f32 %v676, %v685
        %v688 = vmul.f32 %v677, %v686
        %v689 = vadd.f32 %v674, %v687
        %v690 = vadd.f32 %v675, %v688
        %v691 = vmul.f32 %v341, %v341
        %v692 = vmul.f32 %v346, %v346
        %v693 = vmul.f32 %v341, %v691
        %v694 = vmul.f32 %v346, %v692
        %v695 = vmul.f32 %v693, 0.044715
        %v696 = vmul.f32 %v694, 0.044715
        %v697 = vadd.f32 %v341, %v695
        %v698 = vadd.f32 %v346, %v696
        %v699 = vmul.f32 %v697, 0.7978846
        %v700 = vmul.f32 %v698, 0.7978846
        %v701 = vtanh.pop %v699
        %v702 = vtanh.pop %v700
        %v703 = vadd.f32 %v701, 1.0
        %v704 = vadd.f32 %v702, 1.0
        %v705 = vmul.f32 %v703, 0.5
        %v706 = vmul.f32 %v704, 0.5
        %v707 = vmul.f32 %v341, %v705
        %v708 = vmul.f32 %v346, %v706
        %v709 = vmul.f32 %v689, %v707
        %v710 = vmul.f32 %v690, %v708
        %v711 = vld [vmem:[%s1 + $0x80] sm:$0xff]
        %v712 = vld [vmem:[%s1 + $0x88] sm:$0xff]
        %v713 = vld [vmem:[%s1 + $0x90] sm:$0xff]
        %v714 = vld [vmem:[%s1 + $0x98] sm:$0xff]
        %v715 = vld [vmem:[%s1 + $0xa8] sm:$0x1]
        %v716 = vlaneseq
        %v717 = vshrl.u32 %v716, 7
        %v718 = vsub.s32 0, %v717
        %v719 = vrot.slane %v715, %v718
        %v721 = vsel %vm183, %v709, 0
        %v724 = vsel %vm183, %v710, 0
        %726 = vmatprep.subr.mxu0 0.0
        %727 = vmatpush1.msra.mxu0 %v711
        %728 = vmatprep.subr.mxu0 0.0
        %729 = vmatpush1.msra.mxu0 %v712
        %730 = vmatprep.subr.mxu0 0.0
        %731 = vmatpush1.msra.mxu0 %v713
        %732 = vmatprep.subr.mxu0 0.0
        %733 = vmatpush1.msra.mxu0 %v714
        %734 = vmatprep.subr.mxu0 0.0
        %735 = vmatpush1.msra.mxu0 0.0
        %736 = vmatprep.subr.mxu0 0.0
        %737 = vmatpush1.msra.mxu0 0.0
        %738 = vmatprep.subr.mxu0 0.0
        %739 = vmatpush1.msra.mxu0 0.0
        %740 = vmatprep.subr.mxu0 0.0
        %741 = vmatpush1.msra.mxu0 0.0
        %742 = vmatprep.subr.mxu0 0.0
        %743 = vmatpush1.msra.mxu0 0.0
        %744 = vmatprep.subr.mxu0 0.0
        %745 = vmatpush1.msra.mxu0 0.0
        %746 = vmatprep.subr.mxu0 0.0
        %747 = vmatpush1.msra.mxu0 0.0
        %748 = vmatprep.subr.mxu0 0.0
        %749 = vmatpush1.msra.mxu0 0.0
        %750 = vmatprep.subr.mxu0 0.0
        %751 = vmatpush1.msra.mxu0 0.0
        %752 = vmatprep.subr.mxu0 0.0
        %753 = vmatpush1.msra.mxu0 0.0
        %754 = vmatprep.subr.mxu0 0.0
        %755 = vmatpush1.msra.mxu0 0.0
        %756 = vmatprep.subr.mxu0 0.0
        %757 = vmatpush1.msra.mxu0 0.0
        %758 = vmatprep.subr.mxu0 0.0
        %759 = vmatpush1.msra.mxu0 0.0
        %760 = vmatprep.subr.mxu0 0.0
        %761 = vmatpush1.msra.mxu0 0.0
        %762 = vmatprep.subr.mxu0 0.0
        %763 = vmatpush1.msra.mxu0 0.0
        %764 = vmatprep.subr.mxu0 0.0
        %765 = vmatpush1.msra.mxu0 0.0
        %766 = vmatprep.subr.mxu0 0.0
        %767 = vmatpush1.msra.mxu0 0.0
        %768 = vmatprep.subr.mxu0 0.0
        %769 = vmatpush1.msra.mxu0 0.0
        %770 = vmatprep.subr.mxu0 0.0
        %771 = vmatpush1.msra.mxu0 0.0
        %772 = vmatprep.subr.mxu0 0.0
        %773 = vmatpush1.msra.mxu0 0.0
        %774 = vmatprep.subr.mxu0 0.0
        %775 = vmatpush1.msra.mxu0 0.0
        %776 = vmatprep.subr.mxu0 0.0
        %777 = vmatpush1.msra.mxu0 0.0
        %778 = vmatprep.subr.mxu0 0.0
        %779 = vmatpush1.msra.mxu0 0.0
        %780 = vmatprep.subr.mxu0 0.0
        %781 = vmatpush1.msra.mxu0 0.0
        %782 = vmatprep.subr.mxu0 0.0
        %783 = vmatpush1.msra.mxu0 0.0
        %784 = vmatprep.subr.mxu0 0.0
        %785 = vmatpush1.msra.mxu0 0.0
        %786 = vmatprep.subr.mxu0 0.0
        %787 = vmatpush1.msra.mxu0 0.0
        %788 = vmatprep.subr.mxu0 0.0
        %789 = vmatpush1.msra.mxu0 0.0
        %790 = vmatprep.mubr.f32.mxu0 0.0
        %791 = vmatmul.mubr.f32.gmra.mrb[0].mxu0 %v721
        %v792 = vpop.f32.mrb[0].mxu0
        %v793 = vadd.f32 %v719, %v792
        %v794 = vpop.f32.mrb[0].mxu0
        %795 = vmatprep.mubr.f32.mxu0 0.0
        %796 = vmatmul.mubr.f32.gmra.mrb[0].mxu0 %v724
        %v797 = vpop.f32.mrb[0].mxu0
        %v798 = vadd.f32 %v719, %v797
        %v799 = vpop.f32.mrb[0].mxu0
        %800 = vdwg.mxu0
        %801 = vst.msk [vmem:[%s137] sm:$0xff] %vm183, %v793
        %802 = vst.msk [vmem:[%s137 + $0x8] sm:$0xff] %vm183, %v798
        %s803 = sand.u32 %s71, 1
        %s804 = scalar_lea.sflag [#allocation3], %s803
        %s805 = sand.u32 %s71, 1
        %s806 = smul.addr %s805, 16
        %s807 = scalar_lea.vmem [#allocation2], %s806
        // Predicated region
        $region29: #{recurrent_block_forward.1} parent=27 // pred_check
          %p808 = pneg %p81
        $region30: #{recurrent_block_forward.1} parent=27 // pred_check_branch
          %810 = sbr.rel (%p808) target = $region32
        $region31: #{recurrent_block_forward.1} parent=27 // pred_region
          %s811 = smul.u32 2, %s16
          %s813 = ssub.s32 256, 256
          %814 = vsyncadd %s804, %s813
          %s815 = smul.addr %s811, 128
          %s816 = scalar_lea.hbm %s2, %s815
          %s817 = sshll.u32 %s807, 4
          %s818 = int_to_ptr.vmem [resolvable:$true] %s817
          %823 = dma.vmem_to_hbm [thread:$0]  %s818, 256, %s816, %s804, 128, 128, 8
        $region32: #{recurrent_block_forward.1} parent=27 // pred_fallthru
          _
      $region28: #{recurrent_block_forward.1} parent=5 // pred_fallthru
        _
      %p824 = scmp.le.s32.totalorder 2, %s11
      // Predicated region
      $region33: #{recurrent_block_forward.1} parent=5 // pred_check
        %p825 = pneg %p824
      $region34: #{recurrent_block_forward.1} parent=5 // pred_check_branch
        %827 = sbr.rel (%p825) target = $region36
      $region35: #{recurrent_block_forward.1} parent=5 // pred_region
        %s828 = ssub.s32 %s11, 2
        // Predicated region
        $region37: #{recurrent_block_forward.1} parent=35 // pred_check
          %p829 = pneg %p87
        $region38: #{recurrent_block_forward.1} parent=35 // pred_check_branch
          %831 = sbr.rel (%p829) target = $region40
        $region39: #{recurrent_block_forward.1} parent=35 // pred_region
          %s832 = sand.u32 %s72, 1
          %s833 = scalar_lea.sflag [#allocation3], %s832
          %s834 = sand.u32 %s72, 1
          %s835 = smul.addr %s834, 16
          %s836 = scalar_lea.vmem [#allocation2], %s835
          %837 = dma.done %s833, 256
        $region40: #{recurrent_block_forward.1} parent=35 // pred_fallthru
          _
      $region36: #{recurrent_block_forward.1} parent=5 // pred_fallthru
        _
    $region6: #{recurrent_block_forward.1} parent=1 // loop_footer
      %s15 = sadd.s32 1, %s11
    $region7: #{recurrent_block_forward.1} parent=1 // loop_footer_branch
      %10 = sbr.rel target = $region3
    $region8: #{recurrent_block_forward.1} parent=1 // loop_exit
      _
    %838 = vsyncpa [#allocation3], 1
    %s839 = scalar_lea.sflag [#allocation3], 1
    %840 = vsyncpa %s839, 1

</llo_original>
